<compile_context>
chip_gen: v7x
topology: tpu7x:2x2x1
jax: 0.10.0
libtpu: 0.0.40
codegen_flags: <defaults>
</compile_context>

<pallas_src>
import math

import jax
import jax.numpy as jnp
from jax.experimental import pallas as pl
from jax.experimental.pallas import tpu as pltpu


_LANES = 1024          # lane-dense last dim (8 x 128-lane vregs, wide vst)
_BLOCK_ROWS = 256      # 256 * 1024 * 4B = 1 MiB per f32 block (<= 4 MiB target)


def _copy_kernel(x_ref, o_ref):
    # Pure contiguous-copy: the TPU analog of .contiguous() materialization.
    o_ref[...] = x_ref[...]


def _round_up(n, m):
    return ((n + m - 1) // m) * m


def _pallas_contiguous_copy(x):
    """Identity copy of `x` through VMEM via a Pallas kernel (new buffer)."""
    orig_shape = x.shape
    dtype = x.dtype
    n = math.prod(orig_shape) if orig_shape else 1
    itemsize = jnp.dtype(dtype).itemsize

    flat = jnp.reshape(x, (n,))

    # Lane-dense 2-D view: last dim is a large multiple of 128.
    n_lane_pad = _round_up(n, _LANES)
    rows = n_lane_pad // _LANES

    if rows <= _BLOCK_ROWS:
        # Tiny array: one full-array block (block == array dims is always
        # legal and uses < ~1 MiB of VMEM, so no OOM risk).
        rows_pad = rows
        block_rows = rows
        grid = (1,)
    else:
        # Tiled path: (256, 1024) blocks, rows padded so blocks divide evenly.
        rows_pad = _round_up(rows, _BLOCK_ROWS)
        block_rows = _BLOCK_ROWS
        grid = (rows_pad // _BLOCK_ROWS,)

    n_total = rows_pad * _LANES
    if n_total != n:
        flat = jnp.pad(flat, (0, n_total - n))
    x2d = jnp.reshape(flat, (rows_pad, _LANES))

    y2d = pl.pallas_call(
        _copy_kernel,
        out_shape=jax.ShapeDtypeStruct((rows_pad, _LANES), dtype),
        grid_spec=pltpu.PrefetchScalarGridSpec(
            num_scalar_prefetch=0,
            grid=grid,
            in_specs=[pl.BlockSpec((block_rows, _LANES), lambda i: (i, 0))],
            out_specs=pl.BlockSpec((block_rows, _LANES), lambda i: (i, 0)),
        ),
        compiler_params=pltpu.CompilerParams(
            # "parallel" lets v7x shard the copy across its 2 TensorCores;
            # measured no-op on v5e/v6e (1 TC).
            dimension_semantics=("parallel",),
            # Explicit VMEM budget (well above the ~4 MiB this pipeline uses,
            # well below every generation's physical VMEM).
            vmem_limit_bytes=32 * 1024 * 1024,
        ),
        cost_estimate=pl.CostEstimate(
            flops=0,
            transcendentals=0,
            bytes_accessed=2 * n_total * itemsize,
        ),
    )(x2d)

    y_flat = jnp.reshape(y2d, (n_total,))
    if n_total != n:
        y_flat = y_flat[:n]
    return jnp.reshape(y_flat, orig_shape)


class Reshape:
    """JAX/Pallas equivalent of the PyTorch Reshape module.

    Default path is a metadata-only jnp.reshape (free on TPU).  Pass
    materialize=True to force an explicit VMEM-routed copy via the Pallas
    kernel (the TPU analog of `.contiguous()` producing a fresh buffer).
    """

    def __init__(self, *shape, materialize=False):
        self.shape = [-1] + list(shape)
        self.materialize = materialize

    def __call__(self, x):
        total = math.prod(x.shape)

        # Resolve the -1 in the target shape (mirrors torch .view semantics).
        tail = tuple(self.shape[1:])
        tail_prod = math.prod(tail) if tail else 1
        assert total % tail_prod == 0, "Incompatible reshape"
        out_shape = (total // tail_prod, *tail)

        if self.materialize:
            x_src = _pallas_contiguous_copy(x)
        else:
            # XLA arrays are already contiguous; reshape is metadata-only.
            x_src = x

        res = jnp.reshape(x_src, out_shape)

        msg = 'Incorrect shape size:\n\tinpt: {}\n\toutput: {}'.format(
            x.shape, res.shape)
        assert res.shape[0] == x.shape[0], msg
        return res


if __name__ == "__main__":
    key = jax.random.PRNGKey(0)

    # NCHW input: batch=2, channels=4, spatial=16x16.
    x = jax.random.normal(key, (2, 4, 16, 16), dtype=jnp.float32)
    ref = jnp.reshape(x, (-1, 16, 64))

    # Default (recommended) path: no copy, metadata-only reshape.
    y_free = jax.block_until_ready(Reshape(16, 64)(x))
    assert y_free.shape == (2, 16, 64), y_free.shape
    assert y_free.dtype == x.dtype
    assert bool(jnp.all(y_free == ref))

    # Explicit materialization path: runs the Pallas copy kernel
    # (tiny array -> single lane-dense full-array block).
    y_copy = jax.block_until_ready(Reshape(16, 64, materialize=True)(x))
    assert y_copy.shape == (2, 16, 64), y_copy.shape
    assert y_copy.dtype == x.dtype
    assert bool(jnp.all(y_copy == ref))

    # Larger input exercising the tiled multi-block path:
    # 4*128*32*32 f32 = 2 MiB -> 512 rows of 1024 lanes -> grid of 2 blocks
    # (even grid, good for v7x 2-TC sharding).
    x2 = jax.random.normal(jax.random.PRNGKey(0), (4, 128, 32, 32),
                           dtype=jnp.float32)
    y2 = jax.block_until_ready(Reshape(128, 1024, materialize=True)(x2))
    ref2 = jnp.reshape(x2, (-1, 128, 1024))
    assert y2.shape == (4, 128, 1024), y2.shape
    assert bool(jnp.all(y2 == ref2))

    print("KERNEL_OK")
</pallas_src>

<mosaic_0001>
module attributes {stable_mosaic.version = 11 : i64} {
  func.func @_copy_kernel(%arg0: i32, %arg1: memref<2x1024xf32, #tpu.memory_space<vmem>>, %arg2: memref<2x1024xf32, #tpu.memory_space<vmem>>) attributes {dimension_semantics = [#tpu.dimension_semantics<parallel>], iteration_bounds = array<i64: 1>, scalar_prefetch = 0 : i64, scratch_operands = 0 : i64, tpu.core_type = #tpu.core_type<tc>, window_params = [{transform_indices = @transform_0, window_bounds = array<i64: 2, 1024>}, {transform_indices = @transform_1, window_bounds = array<i64: 2, 1024>}]} {
    %c0 = arith.constant 0 : index
    %c0_0 = arith.constant 0 : index
    %0 = vector.load %arg1[%c0, %c0_0] : memref<2x1024xf32, #tpu.memory_space<vmem>>, vector<2x1024xf32>
    %c0_1 = arith.constant 0 : index
    %c0_2 = arith.constant 0 : index
    %1 = vector.load %arg2[%c0_1, %c0_2] : memref<2x1024xf32, #tpu.memory_space<vmem>>, vector<2x1024xf32>
    tpu.vector_store %arg2[%c0_1, %c0_2], %0 {strides = array<i32>} : memref<2x1024xf32, #tpu.memory_space<vmem>>, vector<2x1024xf32>,
    return
  }
  func.func @transform_0(%arg0: i32) -> (i32, i32) {
    %c0_i32 = arith.constant 0 : i32
    %c0_i32_0 = arith.constant 0 : i32
    return %arg0, %c0_i32 : i32, i32
  }
  func.func @transform_1(%arg0: i32) -> (i32, i32) {
    %c0_i32 = arith.constant 0 : i32
    %c0_i32_0 = arith.constant 0 : i32
    return %arg0, %c0_i32 : i32, i32
  }
}

</mosaic_0001>

<llo_original>
// kernel: tpu_custom_call.1
$region0: #{tpu_custom_call.1}
  #allocation0 [shape = 'u32[]', space=smem, size = 0x4, offset = 0x4, fixed_abs, tag = 'smem constant byte address 0x4 - core index']
  #allocation1 [shape = 'u32[144,128]{1,0:T(1,128)}', space=vmem, size = 0x12000, scoped, tag = 'internal scratch']
  %s0 = inlined_call_operand.hbm [shape: f32[2,1024], index: 0, kind: input, shape index: {}]
  %s1 = inlined_call_operand.hbm [shape: f32[2,1024], index: 1, kind: output, shape index: {}]
  %s2 = sld [smem:[#allocation0]]
  $region18: #{tpu_custom_call.1} parent=0
    _
  %s4 = ssub.s32 1, %s2
  %s5 = scalar_select 0, %s4, %s2
  $region1: #{tpu_custom_call.1} parent=0
    #allocation2 [shape = 'u8[8192]{0}', space=vmem, size = 0x2000, scoped, tag = 'input window, operand 0, single buffered']
    #allocation3 [shape = 's32[1]{0}', space=sflag, size = 0x4, scoped, tag = 'scoped memory for tpu_custom_call.1']
    #allocation4 [shape = 's32[1]{0}', space=sflag, size = 0x4, scoped, tag = 'scoped memory for tpu_custom_call.1']
    #allocation5 [shape = 'u8[8192]{0}', space=vmem, size = 0x2000, scoped, tag = 'output window, operand 0, single buffered']
    %6 = vsyncpa [#allocation3], 0
    %7 = vsyncpa [#allocation4], 0
    // Predicated region
    $region2: #{tpu_custom_call.1} parent=1 // pred_check
      _
    $region3: #{tpu_custom_call.1} parent=1 // pred_check_branch
      %9 = sbr.rel (0) target = $region5
    $region4: #{tpu_custom_call.1} parent=1 // pred_region
      %s11 = ssub.s32 256, 256
      %12 = vsyncadd [#allocation3], %s11
      %s14 = sshll.u32 [#allocation2], 4
      %s15 = int_to_ptr.vmem [resolvable:$true] %s14
      %17 = dma.hbm_to_vmem [thread:$0]  %s0, 256, %s15, [#allocation3]
    $region5: #{tpu_custom_call.1} parent=1 // pred_fallthru
      _
    // Predicated region
    $region6: #{tpu_custom_call.1} parent=1 // pred_check
      _
    $region7: #{tpu_custom_call.1} parent=1 // pred_check_branch
      %19 = sbr.rel (0) target = $region9
    $region8: #{tpu_custom_call.1} parent=1 // pred_region
      %20 = dma.done [#allocation3], 256
    $region9: #{tpu_custom_call.1} parent=1 // pred_fallthru
      _
    %v21 = vld [vmem:[#allocation2] sm:$0xff]
    %v22 = vld [vmem:[#allocation2 + $0x8] sm:$0xff]
    %23 = vst [vmem:[#allocation5] sm:$0xff] %v21
    %24 = vst [vmem:[#allocation5 + $0x8] sm:$0xff] %v22
    // Predicated region
    $region10: #{tpu_custom_call.1} parent=1 // pred_check
      _
    $region11: #{tpu_custom_call.1} parent=1 // pred_check_branch
      %26 = sbr.rel (0) target = $region13
    $region12: #{tpu_custom_call.1} parent=1 // pred_region
      %s28 = ssub.s32 256, 256
      %29 = vsyncadd [#allocation4], %s28
      %s31 = sshll.u32 [#allocation5], 4
      %s32 = int_to_ptr.vmem [resolvable:$true] %s31
      %34 = dma.vmem_to_hbm [thread:$0]  %s32, 256, %s1, [#allocation4]
    $region13: #{tpu_custom_call.1} parent=1 // pred_fallthru
      _
    // Predicated region
    $region14: #{tpu_custom_call.1} parent=1 // pred_check
      _
    $region15: #{tpu_custom_call.1} parent=1 // pred_check_branch
      %36 = sbr.rel (0) target = $region17
    $region16: #{tpu_custom_call.1} parent=1 // pred_region
      %37 = dma.done [#allocation4], 256
    $region17: #{tpu_custom_call.1} parent=1 // pred_fallthru
      _
    %38 = vsyncpa [#allocation3], 1
    %39 = vsyncpa [#allocation4], 1

</llo_original>
